<compile_context>
chip_gen: v7x
topology: tpu7x:2x2x1
jax: 0.10.0
libtpu: 0.0.40
codegen_flags: <defaults>
</compile_context>

<pallas_src>
import functools
import numpy as np
import jax
import jax.numpy as jnp
from jax import lax
from jax.experimental import pallas as pl
from jax.experimental.pallas import tpu as pltpu

LANE = 128


def _round_up(x: int, m: int) -> int:
    return ((x + m - 1) // m) * m


# ------------------------ trace-time linear-operator construction (numpy) -----------------

def _interp_pad_matrix(l_in: int, l_out: int, pad: int) -> np.ndarray:
    """(l_in, l_out + 2*pad): PyTorch linear interp (align_corners=False) into the middle
    l_out columns; the pad border columns are zero (doubles as conv zero-padding)."""
    m = np.zeros((l_in, l_out + 2 * pad), dtype=np.float64)
    scale = l_in / l_out
    for j in range(l_out):
        src = max(scale * (j + 0.5) - 0.5, 0.0)
        x1 = min(int(np.floor(src)), l_in - 1)
        x2 = min(x1 + 1, l_in - 1)
        lam = src - x1
        m[x1, pad + j] += 1.0 - lam
        m[x2, pad + j] += lam
    return m


def _identity_pad_matrix(l: int, pad: int) -> np.ndarray:
    """(l, l + 2*pad): identity in the middle (no resize), zero conv padding at borders."""
    m = np.zeros((l, l + 2 * pad), dtype=np.float64)
    m[np.arange(l), pad + np.arange(l)] = 1.0
    return m


def _layer_operator_np(w, b, m_pad: np.ndarray, l_out: int, d_in_pad: int, d_out_pad: int):
    """Fold (interp/pad matrix, conv weight, bias) into one zero-padded affine operator.

    Returns numpy A_full (d_in_pad, d_out_pad) f32 and b_full (1, d_out_pad) f32 so that
        conv(interp(x)) flattened == x_flat_padded @ A_full + b_full  (on the true columns).
    Padded rows/cols are zero, so padded activations stay exactly zero through LeakyReLU.
    """
    w = np.asarray(w, np.float64)
    b = np.asarray(b, np.float64)
    c_out, c_in, k = w.shape
    l_in = m_pad.shape[0]
    # K column-shifted copies of the padded interp matrix -> (K, L_in, L_out)
    m_shift = np.stack([m_pad[:, t:t + l_out] for t in range(k)], axis=0)
    a = np.einsum('oct,tij->cioj', w, m_shift).reshape(c_in * l_in, c_out * l_out)
    a_full = np.zeros((d_in_pad, d_out_pad), np.float32)
    a_full[:c_in * l_in, :c_out * l_out] = a.astype(np.float32)
    b_full = np.zeros((1, d_out_pad), np.float32)
    b_full[0, :c_out * l_out] = np.repeat(b, l_out).astype(np.float32)
    return a_full, b_full


def build_operators(params, *, last_size, hidden_dims, sizes, kernel_sizes,
                    operator_dtype=jnp.float32):
    """List of (A, b_vec) affine operators (one per stage), all widths padded to 128-mult.

    A is stored in `operator_dtype` (f32 or bf16); biases stay f32 (added on the f32 acc).
    Returns (ops, final_len, d_out_true).
    """
    ops = []
    l_in = last_size[0]
    c_in = hidden_dims[0]
    d_in_pad = _round_up(c_in * l_in, LANE)
    for (w, b), s, k in zip(params["deconv"], sizes, kernel_sizes[:-1]):
        pad = (k - 1) // 2
        c_out = int(np.asarray(w).shape[0])
        d_out_pad = _round_up(c_out * s, LANE)
        a_np, b_np = _layer_operator_np(w, b, _interp_pad_matrix(l_in, s, pad), s,
                                        d_in_pad, d_out_pad)
        ops.append((jnp.asarray(a_np, operator_dtype), jnp.asarray(b_np, jnp.float32)))
        l_in, c_in, d_in_pad = s, c_out, d_out_pad
    w, b = params["last"]                               # Conv1d(k=3, pad=1), no resize
    c_out = int(np.asarray(w).shape[0])
    d_out_true = c_out * l_in
    d_out_pad = _round_up(d_out_true, LANE)
    a_np, b_np = _layer_operator_np(w, b, _identity_pad_matrix(l_in, 1), l_in,
                                    d_in_pad, d_out_pad)
    ops.append((jnp.asarray(a_np, operator_dtype), jnp.asarray(b_np, jnp.float32)))
    return ops, l_in, d_out_true


# ---------------------------------- fused Pallas kernel ----------------------------------

def _fused_decoder_kernel(*refs, n_layers: int, neg_slope: float):
    # refs = (x_ref, a0_ref, b0_ref, a1_ref, b1_ref, ..., o_ref)
    # x_ref : (TM, D0_pad) batch tile (batch folded into MXU M dim)
    # a_ref : (D_in_pad, D_out_pad) fused interp+conv operator (f32 or bf16)
    # b_ref : (1, D_out_pad) f32 bias row
    x_ref = refs[0]
    o_ref = refs[-1]
    h = x_ref[...]
    for layer in range(n_layers):                       # static unroll over stages
        a_ref = refs[1 + 2 * layer]
        b_ref = refs[2 + 2 * layer]
        acc = jnp.dot(h.astype(a_ref.dtype), a_ref[...],
                      preferred_element_type=jnp.float32)
        acc = acc + b_ref[...]                          # bias on f32 accumulator
        if layer < n_layers - 1:                        # LeakyReLU after every deconv stage
            acc = jnp.maximum(acc, neg_slope * acc)     # (no activation after last_conv)
        h = acc
    o_ref[...] = h.astype(o_ref.dtype)


def fused_decoder_call(x_flat, ops, *, neg_slope=0.01, tm=256):
    """x_flat: (N, C0*L0);  ops: padded (A, b_vec) list.  Returns (N, D_last_pad) f32."""
    n, d_in = x_flat.shape
    n_layers = len(ops)
    d_in_pad = ops[0][0].shape[0]
    d_out_pad = ops[-1][0].shape[1]

    tm = min(tm, _round_up(max(n, 1), 8))               # batch tile (multiple of 8 rows)
    n_pad = _round_up(n, tm)
    x = x_flat
    if n_pad != n or d_in_pad != d_in:
        x = jnp.pad(x_flat, ((0, n_pad - n), (0, d_in_pad - d_in)))

    args = [x]
    in_specs = [pl.BlockSpec((tm, d_in_pad), lambda i: (i, 0))]
    for a, b in ops:
        args.append(a)
        args.append(b)
        in_specs.append(pl.BlockSpec(a.shape, lambda i: (0, 0)))   # VMEM-resident operator
        in_specs.append(pl.BlockSpec(b.shape, lambda i: (0, 0)))
    out_specs = pl.BlockSpec((tm, d_out_pad), lambda i: (i, 0))
    grid = (n_pad // tm,)

    # Advisory cost estimate for XLA scheduling around the call.
    flops = 2 * n_pad * sum(int(a.shape[0]) * int(a.shape[1]) for a, _ in ops)
    op_bytes = sum(int(a.size) * a.dtype.itemsize + int(b.size) * b.dtype.itemsize
                   for a, b in ops)
    bytes_accessed = (int(x.size) * x.dtype.itemsize
                      + n_pad * d_out_pad * x_flat.dtype.itemsize
                      + op_bytes)

    # VMEM budget: resident operators + double-buffered batch tiles + live intermediates,
    # generous margin, capped well under v7x's 64 MiB physical / 32 MiB scoped default.
    tile_bytes = 2 * tm * (d_in_pad + d_out_pad) * 4
    live_bytes = 2 * tm * max([d_in_pad] + [int(a.shape[1]) for a, _ in ops]) * 4
    vmem_limit = int(min(max(4 * (op_bytes + tile_bytes + live_bytes), 8 << 20), 32 << 20))

    kernel = functools.partial(_fused_decoder_kernel, n_layers=n_layers,
                               neg_slope=neg_slope)
    out = pl.pallas_call(
        kernel,
        out_shape=jax.ShapeDtypeStruct((n_pad, d_out_pad), x_flat.dtype),
        grid=grid,
        in_specs=in_specs,
        out_specs=out_specs,
        compiler_params=pltpu.CompilerParams(
            dimension_semantics=("parallel",),
            vmem_limit_bytes=vmem_limit),
        cost_estimate=pl.CostEstimate(flops=flops, transcendentals=0,
                                      bytes_accessed=bytes_accessed),
    )(*args)
    return out[:n]


# ------------------------------------ forward (Pallas) -----------------------------------

def conv_decoder_forward(x_flat, ops, *, out_channels, final_len, d_out_true,
                         tm=256, neg_slope=0.01):
    # inpt.view(-1, hidden_dims[0], last_size[0]) flattened back to (N, C0*L0) is identity.
    out_flat = fused_decoder_call(x_flat, ops, neg_slope=neg_slope, tm=tm)
    return out_flat[:, :d_out_true].reshape(x_flat.shape[0], out_channels, final_len)


# ------------------------------- parameter construction ----------------------------------

def build_params(key, out_channels, hidden_dims, kernel_sizes):
    """Deterministic Conv1d weights (PyTorch-like uniform init bounds)."""
    params = {"deconv": [], "last": None}
    h0 = hidden_dims[0]
    keys = jax.random.split(key, 2 * len(hidden_dims))
    ki = 0
    for h, k in zip(hidden_dims[1:], kernel_sizes[:-1]):
        bound = 1.0 / np.sqrt(h0 * k)
        w = jax.random.uniform(keys[ki], (h, h0, k), jnp.float32, -bound, bound)
        b = jax.random.uniform(keys[ki + 1], (h,), jnp.float32, -bound, bound)
        params["deconv"].append((w, b))
        h0 = h
        ki += 2
    bound = 1.0 / np.sqrt(hidden_dims[-1] * 3)
    w = jax.random.uniform(keys[ki], (out_channels, hidden_dims[-1], 3),
                           jnp.float32, -bound, bound)
    b = jax.random.uniform(keys[ki + 1], (out_channels,), jnp.float32, -bound, bound)
    params["last"] = (w, b)
    return params


# ---------------------------------- pure-JAX reference -----------------------------------

def _ref_interp_linear(x, size):
    n, c, l_in = x.shape
    scale = l_in / size
    i = jnp.arange(size)
    src = jnp.maximum(scale * (i + 0.5) - 0.5, 0.0)
    x1 = jnp.minimum(jnp.floor(src).astype(jnp.int32), l_in - 1)
    x2 = jnp.minimum(x1 + 1, l_in - 1)
    lam = src - x1.astype(jnp.float32)
    return x[:, :, x1] * (1.0 - lam) + x[:, :, x2] * lam


def _ref_conv1d(x, w, b, pad):
    out = lax.conv_general_dilated(x, w, window_strides=(1,), padding=[(pad, pad)],
                                   dimension_numbers=("NCH", "OIH", "NCH"))
    return out + b[None, :, None]


def conv_decoder_reference(x_flat, params, *, out_channels, last_size, hidden_dims,
                           sizes, kernel_sizes):
    n = x_flat.shape[0]
    x = x_flat.reshape((n, hidden_dims[0], last_size[0]))
    for (w, b), s, k in zip(params["deconv"], sizes, kernel_sizes[:-1]):
        x = _ref_interp_linear(x, s)
        x = _ref_conv1d(x, w, b, (k - 1) // 2)
        x = jnp.where(x >= 0, x, 0.01 * x)
    w, b = params["last"]
    return _ref_conv1d(x, w, b, 1)


# -------------------------------------------- main ---------------------------------------

if __name__ == "__main__":
    # Module configuration (dimension=1, last_conv='normal', default basic_layers)
    out_channels = 3
    last_size = [8]
    hidden_dims = [16, 12, 8]
    sizes = [16, 32]
    kernel_sizes = [3 for _ in hidden_dims]             # kernel_sizes=None branch

    key = jax.random.PRNGKey(0)
    kp, kx = jax.random.split(key)
    params = build_params(kp, out_channels, hidden_dims, kernel_sizes)

    batch = 2
    last_flat_size = hidden_dims[0] * last_size[0]      # 16 * 8 = 128
    x = jax.random.normal(kx, (batch, last_flat_size), jnp.float32)

    ref = jax.block_until_ready(
        conv_decoder_reference(x, params, out_channels=out_channels,
                               last_size=last_size, hidden_dims=hidden_dims,
                               sizes=sizes, kernel_sizes=kernel_sizes))

    # --- f32 operators (exact path) -------------------------------------------------------
    ops32, final_len, d_out_true = build_operators(
        params, last_size=last_size, hidden_dims=hidden_dims, sizes=sizes,
        kernel_sizes=kernel_sizes, operator_dtype=jnp.float32)
    fwd32 = jax.jit(functools.partial(conv_decoder_forward, out_channels=out_channels,
                                      final_len=final_len, d_out_true=d_out_true, tm=256))
    out32 = jax.block_until_ready(fwd32(x, ops32))
    assert out32.shape == (batch, out_channels, sizes[-1]), out32.shape
    np.testing.assert_allclose(np.asarray(out32), np.asarray(ref), rtol=1e-4, atol=1e-4)

    # --- bf16 operators (2x MXU rate on v6e/v7x, half VMEM), f32 accumulation --------------
    ops16, _, _ = build_operators(
        params, last_size=last_size, hidden_dims=hidden_dims, sizes=sizes,
        kernel_sizes=kernel_sizes, operator_dtype=jnp.bfloat16)
    fwd16 = jax.jit(functools.partial(conv_decoder_forward, out_channels=out_channels,
                                      final_len=final_len, d_out_true=d_out_true, tm=256))
    out16 = jax.block_until_ready(fwd16(x, ops16))
    assert out16.shape == (batch, out_channels, sizes[-1]), out16.shape
    np.testing.assert_allclose(np.asarray(out16), np.asarray(ref), rtol=5e-2, atol=5e-2)

    print("KERNEL_OK")
</pallas_src>

<mosaic_0001>
module attributes {stable_mosaic.version = 11 : i64} {
  func.func @_fused_decoder_kernel(%arg0: i32, %arg1: memref<8x128xf32, #tpu.memory_space<vmem>>, %arg2: memref<128x256xf32, #tpu.memory_space<vmem>>, %arg3: memref<1x256xf32, #tpu.memory_space<vmem>>, %arg4: memref<256x256xf32, #tpu.memory_space<vmem>>, %arg5: memref<1x256xf32, #tpu.memory_space<vmem>>, %arg6: memref<256x128xf32, #tpu.memory_space<vmem>>, %arg7: memref<1x128xf32, #tpu.memory_space<vmem>>, %arg8: memref<8x128xf32, #tpu.memory_space<vmem>>) attributes {dimension_semantics = [#tpu.dimension_semantics<parallel>], iteration_bounds = array<i64: 1>, scalar_prefetch = 0 : i64, scratch_operands = 0 : i64, tpu.core_type = #tpu.core_type<tc>, window_params = [{transform_indices = @transform_0, window_bounds = array<i64: 8, 128>}, {pipeline_mode = #tpu.pipeline_mode<synchronous>, transform_indices = @transform_1, window_bounds = array<i64: 128, 256>}, {pipeline_mode = #tpu.pipeline_mode<synchronous>, transform_indices = @transform_2, window_bounds = array<i64: 1, 256>}, {pipeline_mode = #tpu.pipeline_mode<synchronous>, transform_indices = @transform_3, window_bounds = array<i64: 256, 256>}, {pipeline_mode = #tpu.pipeline_mode<synchronous>, transform_indices = @transform_4, window_bounds = array<i64: 1, 256>}, {pipeline_mode = #tpu.pipeline_mode<synchronous>, transform_indices = @transform_5, window_bounds = array<i64: 256, 128>}, {pipeline_mode = #tpu.pipeline_mode<synchronous>, transform_indices = @transform_6, window_bounds = array<i64: 1, 128>}, {transform_indices = @transform_7, window_bounds = array<i64: 8, 128>}]} {
    %c0 = arith.constant 0 : index
    %c0_0 = arith.constant 0 : index
    %0 = vector.load %arg1[%c0, %c0_0] : memref<8x128xf32, #tpu.memory_space<vmem>>, vector<8x128xf32>
    %c0_1 = arith.constant 0 : index
    %c0_2 = arith.constant 0 : index
    %1 = vector.load %arg2[%c0_1, %c0_2] : memref<128x256xf32, #tpu.memory_space<vmem>>, vector<128x256xf32>
    %cst = arith.constant dense<0.000000e+00> : vector<8x256xf32>
    %2 = tpu.matmul %0, %1, %cst {dimension_numbers = #tpu.dot_dimension_numbers<[1], [0], [0], [1], [0, 0, 1, 1], [], []>} : vector<8x128xf32>, vector<128x256xf32>, vector<8x256xf32> -> vector<8x256xf32>
    %c0_3 = arith.constant 0 : index
    %c0_4 = arith.constant 0 : index
    %3 = vector.load %arg3[%c0_3, %c0_4] : memref<1x256xf32, #tpu.memory_space<vmem>>, vector<1x256xf32>
    %4 = vector.broadcast %3 : vector<1x256xf32> to vector<8x256xf32>
    %5 = arith.addf %2, %4 : vector<8x256xf32>
    %cst_5 = arith.constant 0.00999999977 : f32
    %6 = vector.broadcast %cst_5 : f32 to vector<8x256xf32>
    %7 = arith.mulf %6, %5 : vector<8x256xf32>
    %8 = arith.maximumf %5, %7 : vector<8x256xf32>
    %c0_6 = arith.constant 0 : index
    %c0_7 = arith.constant 0 : index
    %9 = vector.load %arg4[%c0_6, %c0_7] : memref<256x256xf32, #tpu.memory_space<vmem>>, vector<256x256xf32>
    %cst_8 = arith.constant dense<0.000000e+00> : vector<8x256xf32>
    %10 = tpu.matmul %8, %9, %cst_8 {dimension_numbers = #tpu.dot_dimension_numbers<[1], [0], [0], [1], [0, 0, 1, 1], [], []>} : vector<8x256xf32>, vector<256x256xf32>, vector<8x256xf32> -> vector<8x256xf32>
    %c0_9 = arith.constant 0 : index
    %c0_10 = arith.constant 0 : index
    %11 = vector.load %arg5[%c0_9, %c0_10] : memref<1x256xf32, #tpu.memory_space<vmem>>, vector<1x256xf32>
    %12 = vector.broadcast %11 : vector<1x256xf32> to vector<8x256xf32>
    %13 = arith.addf %10, %12 : vector<8x256xf32>
    %cst_11 = arith.constant 0.00999999977 : f32
    %14 = vector.broadcast %cst_11 : f32 to vector<8x256xf32>
    %15 = arith.mulf %14, %13 : vector<8x256xf32>
    %16 = arith.maximumf %13, %15 : vector<8x256xf32>
    %c0_12 = arith.constant 0 : index
    %c0_13 = arith.constant 0 : index
    %17 = vector.load %arg6[%c0_12, %c0_13] : memref<256x128xf32, #tpu.memory_space<vmem>>, vector<256x128xf32>
    %cst_14 = arith.constant dense<0.000000e+00> : vector<8x128xf32>
    %18 = tpu.matmul %16, %17, %cst_14 {dimension_numbers = #tpu.dot_dimension_numbers<[1], [0], [0], [1], [0, 0, 1, 1], [], []>} : vector<8x256xf32>, vector<256x128xf32>, vector<8x128xf32> -> vector<8x128xf32>
    %c0_15 = arith.constant 0 : index
    %c0_16 = arith.constant 0 : index
    %19 = vector.load %arg7[%c0_15, %c0_16] : memref<1x128xf32, #tpu.memory_space<vmem>>, vector<1x128xf32>
    %20 = vector.broadcast %19 : vector<1x128xf32> to vector<8x128xf32>
    %21 = arith.addf %18, %20 : vector<8x128xf32>
    %c0_17 = arith.constant 0 : index
    %c0_18 = arith.constant 0 : index
    %22 = vector.load %arg8[%c0_17, %c0_18] : memref<8x128xf32, #tpu.memory_space<vmem>>, vector<8x128xf32>
    tpu.vector_store %arg8[%c0_17, %c0_18], %21 {strides = array<i32>} : memref<8x128xf32, #tpu.memory_space<vmem>>, vector<8x128xf32>,
    return
  }
  func.func @transform_0(%arg0: i32) -> (i32, i32) {
    %c0_i32 = arith.constant 0 : i32
    %c0_i32_0 = arith.constant 0 : i32
    return %arg0, %c0_i32 : i32, i32
  }
  func.func @transform_1(%arg0: i32) -> (i32, i32) {
    %c0_i32 = arith.constant 0 : i32
    %c0_i32_0 = arith.constant 0 : i32
    %c0_i32_1 = arith.constant 0 : i32
    return %c0_i32, %c0_i32_0 : i32, i32
  }
  func.func @transform_2(%arg0: i32) -> (i32, i32) {
    %c0_i32 = arith.constant 0 : i32
    %c0_i32_0 = arith.constant 0 : i32
    %c0_i32_1 = arith.constant 0 : i32
    return %c0_i32, %c0_i32_0 : i32, i32
  }
  func.func @transform_3(%arg0: i32) -> (i32, i32) {
    %c0_i32 = arith.constant 0 : i32
    %c0_i32_0 = arith.constant 0 : i32
    %c0_i32_1 = arith.constant 0 : i32
    return %c0_i32, %c0_i32_0 : i32, i32
  }
  func.func @transform_4(%arg0: i32) -> (i32, i32) {
    %c0_i32 = arith.constant 0 : i32
    %c0_i32_0 = arith.constant 0 : i32
    %c0_i32_1 = arith.constant 0 : i32
    return %c0_i32, %c0_i32_0 : i32, i32
  }
  func.func @transform_5(%arg0: i32) -> (i32, i32) {
    %c0_i32 = arith.constant 0 : i32
    %c0_i32_0 = arith.constant 0 : i32
    %c0_i32_1 = arith.constant 0 : i32
    return %c0_i32, %c0_i32_0 : i32, i32
  }
  func.func @transform_6(%arg0: i32) -> (i32, i32) {
    %c0_i32 = arith.constant 0 : i32
    %c0_i32_0 = arith.constant 0 : i32
    %c0_i32_1 = arith.constant 0 : i32
    return %c0_i32, %c0_i32_0 : i32, i32
  }
  func.func @transform_7(%arg0: i32) -> (i32, i32) {
    %c0_i32 = arith.constant 0 : i32
    %c0_i32_0 = arith.constant 0 : i32
    return %arg0, %c0_i32 : i32, i32
  }
}

</mosaic_0001>

<llo_original>
// kernel: conv_decoder_forward.1
$region0: #{conv_decoder_forward.1}
  #allocation0 [shape = 'u32[]', space=smem, size = 0x4, offset = 0x4, fixed_abs, tag = 'smem constant byte address 0x4 - core index']
  #allocation1 [shape = 'u32[144,128]{1,0:T(1,128)}', space=vmem, size = 0x12000, scoped, tag = 'internal scratch']
  %s0 = inlined_call_operand.vmem [shape: f32[8,128], index: 0, kind: input, shape index: {}]
  %s1 = inlined_call_operand.hbm [shape: f32[128,256], index: 1, kind: input, shape index: {}]
  %s2 = inlined_call_operand.vmem [shape: f32[1,256], index: 2, kind: input, shape index: {}]
  %s3 = inlined_call_operand.hbm [shape: f32[256,256], index: 3, kind: input, shape index: {}]
  %s4 = inlined_call_operand.vmem [shape: f32[1,256], index: 4, kind: input, shape index: {}]
  %s5 = inlined_call_operand.hbm [shape: f32[256,128], index: 5, kind: input, shape index: {}]
  %s6 = inlined_call_operand.vmem [shape: f32[1,128], index: 6, kind: input, shape index: {}]
  %s7 = inlined_call_operand.vmem [shape: f32[8,128], index: 7, kind: output, shape index: {}]
  %s8 = sld [smem:[#allocation0]]
  $region50: #{conv_decoder_forward.1} parent=0
    _
  %s10 = ssub.s32 1, %s8
  %s11 = scalar_select 0, %s10, %s8
  $region1: #{conv_decoder_forward.1} parent=0
    #allocation2 [shape = 'u8[131072]{0}', space=vmem, size = 0x20000, scoped, tag = 'input window, operand 1, single buffered']
    #allocation3 [shape = 's32[1]{0}', space=sflag, size = 0x4, scoped, tag = 'scoped memory for conv_decoder_forward.1']
    #allocation4 [shape = 'u8[262144]{0}', space=vmem, size = 0x40000, scoped, tag = 'input window, operand 3, single buffered']
    #allocation5 [shape = 's32[1]{0}', space=sflag, size = 0x4, scoped, tag = 'scoped memory for conv_decoder_forward.1']
    #allocation6 [shape = 'u8[131072]{0}', space=vmem, size = 0x20000, scoped, tag = 'input window, operand 5, single buffered']
    %12 = vsyncpa [#allocation3], 0
    %13 = vsyncpa [#allocation5], 0
    // Predicated region
    $region2: #{conv_decoder_forward.1} parent=1 // pred_check
      _
    $region3: #{conv_decoder_forward.1} parent=1 // pred_check_branch
      %15 = sbr.rel (0) target = $region5
    $region4: #{conv_decoder_forward.1} parent=1 // pred_region
      _
    $region5: #{conv_decoder_forward.1} parent=1 // pred_fallthru
      _
    // Predicated region
    $region6: #{conv_decoder_forward.1} parent=1 // pred_check
      _
    $region7: #{conv_decoder_forward.1} parent=1 // pred_check_branch
      %17 = sbr.rel (0) target = $region9
    $region8: #{conv_decoder_forward.1} parent=1 // pred_region
      %s19 = ssub.s32 4096, 4096
      %20 = vsyncadd [#allocation3], %s19
      %s21 = sshll.u32 [#allocation2], 4
      %s22 = int_to_ptr.vmem [resolvable:$true] %s21
      %27 = dma.hbm_to_vmem [thread:$0]  %s1, 4096, %s22, [#allocation3], 256, 256, 16
    $region9: #{conv_decoder_forward.1} parent=1 // pred_fallthru
      _
    // Predicated region
    $region10: #{conv_decoder_forward.1} parent=1 // pred_check
      _
    $region11: #{conv_decoder_forward.1} parent=1 // pred_check_branch
      %29 = sbr.rel (0) target = $region13
    $region12: #{conv_decoder_forward.1} parent=1 // pred_region
      _
    $region13: #{conv_decoder_forward.1} parent=1 // pred_fallthru
      _
    // Predicated region
    $region14: #{conv_decoder_forward.1} parent=1 // pred_check
      _
    $region15: #{conv_decoder_forward.1} parent=1 // pred_check_branch
      %31 = sbr.rel (0) target = $region17
    $region16: #{conv_decoder_forward.1} parent=1 // pred_region
      %s33 = ssub.s32 8192, 8192
      %34 = vsyncadd [#allocation5], %s33
      %s35 = sshll.u32 [#allocation4], 4
      %s36 = int_to_ptr.vmem [resolvable:$true] %s35
      %41 = dma.hbm_to_vmem [thread:$0]  %s3, 8192, %s36, [#allocation5], 256, 256, 16
    $region17: #{conv_decoder_forward.1} parent=1 // pred_fallthru
      _
    // Predicated region
    $region18: #{conv_decoder_forward.1} parent=1 // pred_check
      _
    $region19: #{conv_decoder_forward.1} parent=1 // pred_check_branch
      %43 = sbr.rel (0) target = $region21
    $region20: #{conv_decoder_forward.1} parent=1 // pred_region
      _
    $region21: #{conv_decoder_forward.1} parent=1 // pred_fallthru
      _
    // Predicated region
    $region22: #{conv_decoder_forward.1} parent=1 // pred_check
      _
    $region23: #{conv_decoder_forward.1} parent=1 // pred_check_branch
      %45 = sbr.rel (0) target = $region25
    $region24: #{conv_decoder_forward.1} parent=1 // pred_region
      %s47 = ssub.s32 4096, 4096
      %48 = vsyncadd [#allocation5], %s47
      %s49 = sshll.u32 [#allocation6], 4
      %s50 = int_to_ptr.vmem [resolvable:$true] %s49
      %55 = dma.hbm_to_vmem [thread:$0]  %s5, 4096, %s50, [#allocation5], 128, 128, 8
    $region25: #{conv_decoder_forward.1} parent=1 // pred_fallthru
      _
    // Predicated region
    $region26: #{conv_decoder_forward.1} parent=1 // pred_check
      _
    $region27: #{conv_decoder_forward.1} parent=1 // pred_check_branch
      %57 = sbr.rel (0) target = $region29
    $region28: #{conv_decoder_forward.1} parent=1 // pred_region
      _
    $region29: #{conv_decoder_forward.1} parent=1 // pred_fallthru
      _
    // Predicated region
    $region30: #{conv_decoder_forward.1} parent=1 // pred_check
      _
    $region31: #{conv_decoder_forward.1} parent=1 // pred_check_branch
      %59 = sbr.rel (0) target = $region33
    $region32: #{conv_decoder_forward.1} parent=1 // pred_region
      %60 = dma.done [#allocation3], 4096
    $region33: #{conv_decoder_forward.1} parent=1 // pred_fallthru
      _
    // Predicated region
    $region34: #{conv_decoder_forward.1} parent=1 // pred_check
      _
    $region35: #{conv_decoder_forward.1} parent=1 // pred_check_branch
      %62 = sbr.rel (0) target = $region37
    $region36: #{conv_decoder_forward.1} parent=1 // pred_region
      %63 = dma.done [#allocation5], 8192
    $region37: #{conv_decoder_forward.1} parent=1 // pred_fallthru
      _
    // Predicated region
    $region38: #{conv_decoder_forward.1} parent=1 // pred_check
      _
    $region39: #{conv_decoder_forward.1} parent=1 // pred_check_branch
      %65 = sbr.rel (0) target = $region41
    $region40: #{conv_decoder_forward.1} parent=1 // pred_region
      %66 = dma.done [#allocation5], 4096
    $region41: #{conv_decoder_forward.1} parent=1 // pred_fallthru
      _
    %v67 = vld [vmem:[%s0] sm:$0xff]
    %v68 = vld [vmem:[#allocation2] sm:$0xff]
    %v69 = vld [vmem:[#allocation2 + $0x8] sm:$0xff]
    %v70 = vld [vmem:[#allocation2 + $0x10] sm:$0xff]
    %v71 = vld [vmem:[#allocation2 + $0x18] sm:$0xff]
    %v72 = vld [vmem:[#allocation2 + $0x20] sm:$0xff]
    %v73 = vld [vmem:[#allocation2 + $0x28] sm:$0xff]
    %v74 = vld [vmem:[#allocation2 + $0x30] sm:$0xff]
    %v75 = vld [vmem:[#allocation2 + $0x38] sm:$0xff]
    %v76 = vld [vmem:[#allocation2 + $0x40] sm:$0xff]
    %v77 = vld [vmem:[#allocation2 + $0x48] sm:$0xff]
    %v78 = vld [vmem:[#allocation2 + $0x50] sm:$0xff]
    %v79 = vld [vmem:[#allocation2 + $0x58] sm:$0xff]
    %v80 = vld [vmem:[#allocation2 + $0x60] sm:$0xff]
    %v81 = vld [vmem:[#allocation2 + $0x68] sm:$0xff]
    %v82 = vld [vmem:[#allocation2 + $0x70] sm:$0xff]
    %v83 = vld [vmem:[#allocation2 + $0x78] sm:$0xff]
    %v84 = vld [vmem:[#allocation2 + $0x80] sm:$0xff]
    %v85 = vld [vmem:[#allocation2 + $0x88] sm:$0xff]
    %v86 = vld [vmem:[#allocation2 + $0x90] sm:$0xff]
    %v87 = vld [vmem:[#allocation2 + $0x98] sm:$0xff]
    %v88 = vld [vmem:[#allocation2 + $0xa0] sm:$0xff]
    %v89 = vld [vmem:[#allocation2 + $0xa8] sm:$0xff]
    %v90 = vld [vmem:[#allocation2 + $0xb0] sm:$0xff]
    %v91 = vld [vmem:[#allocation2 + $0xb8] sm:$0xff]
    %v92 = vld [vmem:[#allocation2 + $0xc0] sm:$0xff]
    %v93 = vld [vmem:[#allocation2 + $0xc8] sm:$0xff]
    %v94 = vld [vmem:[#allocation2 + $0xd0] sm:$0xff]
    %v95 = vld [vmem:[#allocation2 + $0xd8] sm:$0xff]
    %v96 = vld [vmem:[#allocation2 + $0xe0] sm:$0xff]
    %v97 = vld [vmem:[#allocation2 + $0xe8] sm:$0xff]
    %v98 = vld [vmem:[#allocation2 + $0xf0] sm:$0xff]
    %v99 = vld [vmem:[#allocation2 + $0xf8] sm:$0xff]
    %v100 = vld [vmem:[%s2] sm:$0x3]
    %v102 = vlaneseq
    %v103 = vshrl.u32 %v102, 7
    %v104 = vsub.s32 0, %v103
    %v105 = vrot.slane %v100, %v104
    %v106 = vlaneseq
    %v107 = vshrl.u32 %v106, 7
    %v108 = vsub.s32 1, %v107
    %v109 = vrot.slane %v100, %v108
    %112 = vmatprep.subr.mxu0 %v69
    %113 = vmatpush1.msra.mxu0 %v68
    %114 = vmatprep.subr.mxu0 %v71
    %115 = vmatpush1.msra.mxu0 %v70
    %116 = vmatprep.subr.mxu0 %v73
    %117 = vmatpush1.msra.mxu0 %v72
    %118 = vmatprep.subr.mxu0 %v75
    %119 = vmatpush1.msra.mxu0 %v74
    %120 = vmatprep.subr.mxu0 %v77
    %121 = vmatpush1.msra.mxu0 %v76
    %122 = vmatprep.subr.mxu0 %v79
    %123 = vmatpush1.msra.mxu0 %v78
    %124 = vmatprep.subr.mxu0 %v81
    %125 = vmatpush1.msra.mxu0 %v80
    %126 = vmatprep.subr.mxu0 %v83
    %127 = vmatpush1.msra.mxu0 %v82
    %128 = vmatprep.subr.mxu0 %v85
    %129 = vmatpush1.msra.mxu0 %v84
    %130 = vmatprep.subr.mxu0 %v87
    %131 = vmatpush1.msra.mxu0 %v86
    %132 = vmatprep.subr.mxu0 %v89
    %133 = vmatpush1.msra.mxu0 %v88
    %134 = vmatprep.subr.mxu0 %v91
    %135 = vmatpush1.msra.mxu0 %v90
    %136 = vmatprep.subr.mxu0 %v93
    %137 = vmatpush1.msra.mxu0 %v92
    %138 = vmatprep.subr.mxu0 %v95
    %139 = vmatpush1.msra.mxu0 %v94
    %140 = vmatprep.subr.mxu0 %v97
    %141 = vmatpush1.msra.mxu0 %v96
    %142 = vmatprep.subr.mxu0 %v99
    %143 = vmatpush1.msra.mxu0 %v98
    %144 = vmatprep.subr.mxu0 0.0
    %145 = vmatpush1.msra.mxu0 0.0
    %146 = vmatprep.subr.mxu0 0.0
    %147 = vmatpush1.msra.mxu0 0.0
    %148 = vmatprep.subr.mxu0 0.0
    %149 = vmatpush1.msra.mxu0 0.0
    %150 = vmatprep.subr.mxu0 0.0
    %151 = vmatpush1.msra.mxu0 0.0
    %152 = vmatprep.subr.mxu0 0.0
    %153 = vmatpush1.msra.mxu0 0.0
    %154 = vmatprep.subr.mxu0 0.0
    %155 = vmatpush1.msra.mxu0 0.0
    %156 = vmatprep.subr.mxu0 0.0
    %157 = vmatpush1.msra.mxu0 0.0
    %158 = vmatprep.subr.mxu0 0.0
    %159 = vmatpush1.msra.mxu0 0.0
    %160 = vmatprep.subr.mxu0 0.0
    %161 = vmatpush1.msra.mxu0 0.0
    %162 = vmatprep.subr.mxu0 0.0
    %163 = vmatpush1.msra.mxu0 0.0
    %164 = vmatprep.subr.mxu0 0.0
    %165 = vmatpush1.msra.mxu0 0.0
    %166 = vmatprep.subr.mxu0 0.0
    %167 = vmatpush1.msra.mxu0 0.0
    %168 = vmatprep.subr.mxu0 0.0
    %169 = vmatpush1.msra.mxu0 0.0
    %170 = vmatprep.subr.mxu0 0.0
    %171 = vmatpush1.msra.mxu0 0.0
    %172 = vmatprep.subr.mxu0 0.0
    %173 = vmatpush1.msra.mxu0 0.0
    %174 = vmatprep.subr.mxu0 0.0
    %175 = vmatpush1.msra.mxu0 0.0
    %176 = vmatprep.mubr.f32.mxu0 0.0
    %177 = vmatmul.mubr.f32.gmra.mrb[0].mxu0 %v67
    %v178 = vpop.f32.mrb[0].mxu0
    %v179 = vadd.f32 %v105, %v178
    %v180 = vpop.f32.mrb[0].mxu0
    %v181 = vadd.f32 %v109, %v180
    %182 = vdwg.mxu0
    %v183 = vmul.f32 %v179, 0.01
    %v184 = vmul.f32 %v181, 0.01
    %v185 = vmax.f32 %v179, %v183
    %v186 = vmax.f32 %v181, %v184
    %v187 = vld [vmem:[#allocation4] sm:$0xff]
    %v188 = vld [vmem:[#allocation4 + $0x8] sm:$0xff]
    %v189 = vld [vmem:[#allocation4 + $0x10] sm:$0xff]
    %v190 = vld [vmem:[#allocation4 + $0x18] sm:$0xff]
    %v191 = vld [vmem:[#allocation4 + $0x20] sm:$0xff]
    %v192 = vld [vmem:[#allocation4 + $0x28] sm:$0xff]
    %v193 = vld [vmem:[#allocation4 + $0x30] sm:$0xff]
    %v194 = vld [vmem:[#allocation4 + $0x38] sm:$0xff]
    %v195 = vld [vmem:[#allocation4 + $0x40] sm:$0xff]
    %v196 = vld [vmem:[#allocation4 + $0x48] sm:$0xff]
    %v197 = vld [vmem:[#allocation4 + $0x50] sm:$0xff]
    %v198 = vld [vmem:[#allocation4 + $0x58] sm:$0xff]
    %v199 = vld [vmem:[#allocation4 + $0x60] sm:$0xff]
    %v200 = vld [vmem:[#allocation4 + $0x68] sm:$0xff]
    %v201 = vld [vmem:[#allocation4 + $0x70] sm:$0xff]
    %v202 = vld [vmem:[#allocation4 + $0x78] sm:$0xff]
    %v203 = vld [vmem:[#allocation4 + $0x80] sm:$0xff]
    %v204 = vld [vmem:[#allocation4 + $0x88] sm:$0xff]
    %v205 = vld [vmem:[#allocation4 + $0x90] sm:$0xff]
    %v206 = vld [vmem:[#allocation4 + $0x98] sm:$0xff]
    %v207 = vld [vmem:[#allocation4 + $0xa0] sm:$0xff]
    %v208 = vld [vmem:[#allocation4 + $0xa8] sm:$0xff]
    %v209 = vld [vmem:[#allocation4 + $0xb0] sm:$0xff]
    %v210 = vld [vmem:[#allocation4 + $0xb8] sm:$0xff]
    %v211 = vld [vmem:[#allocation4 + $0xc0] sm:$0xff]
    %v212 = vld [vmem:[#allocation4 + $0xc8] sm:$0xff]
    %v213 = vld [vmem:[#allocation4 + $0xd0] sm:$0xff]
    %v214 = vld [vmem:[#allocation4 + $0xd8] sm:$0xff]
    %v215 = vld [vmem:[#allocation4 + $0xe0] sm:$0xff]
    %v216 = vld [vmem:[#allocation4 + $0xe8] sm:$0xff]
    %v217 = vld [vmem:[#allocation4 + $0xf0] sm:$0xff]
    %v218 = vld [vmem:[#allocation4 + $0xf8] sm:$0xff]
    %v219 = vld [vmem:[#allocation4 + $0x100] sm:$0xff]
    %v220 = vld [vmem:[#allocation4 + $0x108] sm:$0xff]
    %v221 = vld [vmem:[#allocation4 + $0x110] sm:$0xff]
    %v222 = vld [vmem:[#allocation4 + $0x118] sm:$0xff]
    %v223 = vld [vmem:[#allocation4 + $0x120] sm:$0xff]
    %v224 = vld [vmem:[#allocation4 + $0x128] sm:$0xff]
    %v225 = vld [vmem:[#allocation4 + $0x130] sm:$0xff]
    %v226 = vld [vmem:[#allocation4 + $0x138] sm:$0xff]
    %v227 = vld [vmem:[#allocation4 + $0x140] sm:$0xff]
    %v228 = vld [vmem:[#allocation4 + $0x148] sm:$0xff]
    %v229 = vld [vmem:[#allocation4 + $0x150] sm:$0xff]
    %v230 = vld [vmem:[#allocation4 + $0x158] sm:$0xff]
    %v231 = vld [vmem:[#allocation4 + $0x160] sm:$0xff]
    %v232 = vld [vmem:[#allocation4 + $0x168] sm:$0xff]
    %v233 = vld [vmem:[#allocation4 + $0x170] sm:$0xff]
    %v234 = vld [vmem:[#allocation4 + $0x178] sm:$0xff]
    %v235 = vld [vmem:[#allocation4 + $0x180] sm:$0xff]
    %v236 = vld [vmem:[#allocation4 + $0x188] sm:$0xff]
    %v237 = vld [vmem:[#allocation4 + $0x190] sm:$0xff]
    %v238 = vld [vmem:[#allocation4 + $0x198] sm:$0xff]
    %v239 = vld [vmem:[#allocation4 + $0x1a0] sm:$0xff]
    %v240 = vld [vmem:[#allocation4 + $0x1a8] sm:$0xff]
    %v241 = vld [vmem:[#allocation4 + $0x1b0] sm:$0xff]
    %v242 = vld [vmem:[#allocation4 + $0x1b8] sm:$0xff]
    %v243 = vld [vmem:[#allocation4 + $0x1c0] sm:$0xff]
    %v244 = vld [vmem:[#allocation4 + $0x1c8] sm:$0xff]
    %v245 = vld [vmem:[#allocation4 + $0x1d0] sm:$0xff]
    %v246 = vld [vmem:[#allocation4 + $0x1d8] sm:$0xff]
    %v247 = vld [vmem:[#allocation4 + $0x1e0] sm:$0xff]
    %v248 = vld [vmem:[#allocation4 + $0x1e8] sm:$0xff]
    %v249 = vld [vmem:[#allocation4 + $0x1f0] sm:$0xff]
    %v250 = vld [vmem:[#allocation4 + $0x1f8] sm:$0xff]
    %v251 = vld [vmem:[%s4] sm:$0x3]
    %v253 = vlaneseq
    %v254 = vshrl.u32 %v253, 7
    %v255 = vsub.s32 0, %v254
    %v256 = vrot.slane %v251, %v255
    %v257 = vlaneseq
    %v258 = vshrl.u32 %v257, 7
    %v259 = vsub.s32 1, %v258
    %v260 = vrot.slane %v251, %v259
    %263 = vmatprep.subr.mxu0 %v188
    %264 = vmatpush1.msra.mxu0 %v187
    %265 = vmatprep.subr.mxu0 %v190
    %266 = vmatpush1.msra.mxu0 %v189
    %267 = vmatprep.subr.mxu0 %v192
    %268 = vmatpush1.msra.mxu0 %v191
    %269 = vmatprep.subr.mxu0 %v194
    %270 = vmatpush1.msra.mxu0 %v193
    %271 = vmatprep.subr.mxu0 %v196
    %272 = vmatpush1.msra.mxu0 %v195
    %273 = vmatprep.subr.mxu0 %v198
    %274 = vmatpush1.msra.mxu0 %v197
    %275 = vmatprep.subr.mxu0 %v200
    %276 = vmatpush1.msra.mxu0 %v199
    %277 = vmatprep.subr.mxu0 %v202
    %278 = vmatpush1.msra.mxu0 %v201
    %279 = vmatprep.subr.mxu0 %v204
    %280 = vmatpush1.msra.mxu0 %v203
    %281 = vmatprep.subr.mxu0 %v206
    %282 = vmatpush1.msra.mxu0 %v205
    %283 = vmatprep.subr.mxu0 %v208
    %284 = vmatpush1.msra.mxu0 %v207
    %285 = vmatprep.subr.mxu0 %v210
    %286 = vmatpush1.msra.mxu0 %v209
    %287 = vmatprep.subr.mxu0 %v212
    %288 = vmatpush1.msra.mxu0 %v211
    %289 = vmatprep.subr.mxu0 %v214
    %290 = vmatpush1.msra.mxu0 %v213
    %291 = vmatprep.subr.mxu0 %v216
    %292 = vmatpush1.msra.mxu0 %v215
    %293 = vmatprep.subr.mxu0 %v218
    %294 = vmatpush1.msra.mxu0 %v217
    %295 = vmatprep.subr.mxu0 %v220
    %296 = vmatpush1.msra.mxu0 %v219
    %297 = vmatprep.subr.mxu0 %v222
    %298 = vmatpush1.msra.mxu0 %v221
    %299 = vmatprep.subr.mxu0 %v224
    %300 = vmatpush1.msra.mxu0 %v223
    %301 = vmatprep.subr.mxu0 %v226
    %302 = vmatpush1.msra.mxu0 %v225
    %303 = vmatprep.subr.mxu0 %v228
    %304 = vmatpush1.msra.mxu0 %v227
    %305 = vmatprep.subr.mxu0 %v230
    %306 = vmatpush1.msra.mxu0 %v229
    %307 = vmatprep.subr.mxu0 %v232
    %308 = vmatpush1.msra.mxu0 %v231
    %309 = vmatprep.subr.mxu0 %v234
    %310 = vmatpush1.msra.mxu0 %v233
    %311 = vmatprep.subr.mxu0 %v236
    %312 = vmatpush1.msra.mxu0 %v235
    %313 = vmatprep.subr.mxu0 %v238
    %314 = vmatpush1.msra.mxu0 %v237
    %315 = vmatprep.subr.mxu0 %v240
    %316 = vmatpush1.msra.mxu0 %v239
    %317 = vmatprep.subr.mxu0 %v242
    %318 = vmatpush1.msra.mxu0 %v241
    %319 = vmatprep.subr.mxu0 %v244
    %320 = vmatpush1.msra.mxu0 %v243
    %321 = vmatprep.subr.mxu0 %v246
    %322 = vmatpush1.msra.mxu0 %v245
    %323 = vmatprep.subr.mxu0 %v248
    %324 = vmatpush1.msra.mxu0 %v247
    %325 = vmatprep.subr.mxu0 %v250
    %326 = vmatpush1.msra.mxu0 %v249
    %327 = vmatprep.mubr.f32.mxu0 %v186
    %328 = vmatmul.mubr.f32.gmra.mrb[0].mxu0 %v185
    %v329 = vpop.f32.mrb[0].mxu0
    %v330 = vadd.f32 %v256, %v329
    %v331 = vpop.f32.mrb[0].mxu0
    %v332 = vadd.f32 %v260, %v331
    %333 = vdwg.mxu0
    %v334 = vmul.f32 %v330, 0.01
    %v335 = vmul.f32 %v332, 0.01
    %v336 = vmax.f32 %v330, %v334
    %v337 = vmax.f32 %v332, %v335
    %v338 = vld [vmem:[#allocation6] sm:$0xff]
    %v339 = vld [vmem:[#allocation6 + $0x8] sm:$0xff]
    %v340 = vld [vmem:[#allocation6 + $0x10] sm:$0xff]
    %v341 = vld [vmem:[#allocation6 + $0x18] sm:$0xff]
    %v342 = vld [vmem:[#allocation6 + $0x20] sm:$0xff]
    %v343 = vld [vmem:[#allocation6 + $0x28] sm:$0xff]
    %v344 = vld [vmem:[#allocation6 + $0x30] sm:$0xff]
    %v345 = vld [vmem:[#allocation6 + $0x38] sm:$0xff]
    %v346 = vld [vmem:[#allocation6 + $0x40] sm:$0xff]
    %v347 = vld [vmem:[#allocation6 + $0x48] sm:$0xff]
    %v348 = vld [vmem:[#allocation6 + $0x50] sm:$0xff]
    %v349 = vld [vmem:[#allocation6 + $0x58] sm:$0xff]
    %v350 = vld [vmem:[#allocation6 + $0x60] sm:$0xff]
    %v351 = vld [vmem:[#allocation6 + $0x68] sm:$0xff]
    %v352 = vld [vmem:[#allocation6 + $0x70] sm:$0xff]
    %v353 = vld [vmem:[#allocation6 + $0x78] sm:$0xff]
    %v354 = vld [vmem:[#allocation6 + $0x80] sm:$0xff]
    %v355 = vld [vmem:[#allocation6 + $0x88] sm:$0xff]
    %v356 = vld [vmem:[#allocation6 + $0x90] sm:$0xff]
    %v357 = vld [vmem:[#allocation6 + $0x98] sm:$0xff]
    %v358 = vld [vmem:[#allocation6 + $0xa0] sm:$0xff]
    %v359 = vld [vmem:[#allocation6 + $0xa8] sm:$0xff]
    %v360 = vld [vmem:[#allocation6 + $0xb0] sm:$0xff]
    %v361 = vld [vmem:[#allocation6 + $0xb8] sm:$0xff]
    %v362 = vld [vmem:[#allocation6 + $0xc0] sm:$0xff]
    %v363 = vld [vmem:[#allocation6 + $0xc8] sm:$0xff]
    %v364 = vld [vmem:[#allocation6 + $0xd0] sm:$0xff]
    %v365 = vld [vmem:[#allocation6 + $0xd8] sm:$0xff]
    %v366 = vld [vmem:[#allocation6 + $0xe0] sm:$0xff]
    %v367 = vld [vmem:[#allocation6 + $0xe8] sm:$0xff]
    %v368 = vld [vmem:[#allocation6 + $0xf0] sm:$0xff]
    %v369 = vld [vmem:[#allocation6 + $0xf8] sm:$0xff]
    %v370 = vld [vmem:[%s6] sm:$0x1]
    %v372 = vlaneseq
    %v373 = vshrl.u32 %v372, 7
    %v374 = vsub.s32 0, %v373
    %v375 = vrot.slane %v370, %v374
    %377 = vmatprep.subr.mxu0 0.0
    %378 = vmatpush1.msra.mxu0 %v338
    %379 = vmatprep.subr.mxu0 0.0
    %380 = vmatpush1.msra.mxu0 %v339
    %381 = vmatprep.subr.mxu0 0.0
    %382 = vmatpush1.msra.mxu0 %v340
    %383 = vmatprep.subr.mxu0 0.0
    %384 = vmatpush1.msra.mxu0 %v341
    %385 = vmatprep.subr.mxu0 0.0
    %386 = vmatpush1.msra.mxu0 %v342
    %387 = vmatprep.subr.mxu0 0.0
    %388 = vmatpush1.msra.mxu0 %v343
    %389 = vmatprep.subr.mxu0 0.0
    %390 = vmatpush1.msra.mxu0 %v344
    %391 = vmatprep.subr.mxu0 0.0
    %392 = vmatpush1.msra.mxu0 %v345
    %393 = vmatprep.subr.mxu0 0.0
    %394 = vmatpush1.msra.mxu0 %v346
    %395 = vmatprep.subr.mxu0 0.0
    %396 = vmatpush1.msra.mxu0 %v347
    %397 = vmatprep.subr.mxu0 0.0
    %398 = vmatpush1.msra.mxu0 %v348
    %399 = vmatprep.subr.mxu0 0.0
    %400 = vmatpush1.msra.mxu0 %v349
    %401 = vmatprep.subr.mxu0 0.0
    %402 = vmatpush1.msra.mxu0 %v350
    %403 = vmatprep.subr.mxu0 0.0
    %404 = vmatpush1.msra.mxu0 %v351
    %405 = vmatprep.subr.mxu0 0.0
    %406 = vmatpush1.msra.mxu0 %v352
    %407 = vmatprep.subr.mxu0 0.0
    %408 = vmatpush1.msra.mxu0 %v353
    %409 = vmatprep.subr.mxu0 0.0
    %410 = vmatpush1.msra.mxu0 %v354
    %411 = vmatprep.subr.mxu0 0.0
    %412 = vmatpush1.msra.mxu0 %v355
    %413 = vmatprep.subr.mxu0 0.0
    %414 = vmatpush1.msra.mxu0 %v356
    %415 = vmatprep.subr.mxu0 0.0
    %416 = vmatpush1.msra.mxu0 %v357
    %417 = vmatprep.subr.mxu0 0.0
    %418 = vmatpush1.msra.mxu0 %v358
    %419 = vmatprep.subr.mxu0 0.0
    %420 = vmatpush1.msra.mxu0 %v359
    %421 = vmatprep.subr.mxu0 0.0
    %422 = vmatpush1.msra.mxu0 %v360
    %423 = vmatprep.subr.mxu0 0.0
    %424 = vmatpush1.msra.mxu0 %v361
    %425 = vmatprep.subr.mxu0 0.0
    %426 = vmatpush1.msra.mxu0 %v362
    %427 = vmatprep.subr.mxu0 0.0
    %428 = vmatpush1.msra.mxu0 %v363
    %429 = vmatprep.subr.mxu0 0.0
    %430 = vmatpush1.msra.mxu0 %v364
    %431 = vmatprep.subr.mxu0 0.0
    %432 = vmatpush1.msra.mxu0 %v365
    %433 = vmatprep.subr.mxu0 0.0
    %434 = vmatpush1.msra.mxu0 %v366
    %435 = vmatprep.subr.mxu0 0.0
    %436 = vmatpush1.msra.mxu0 %v367
    %437 = vmatprep.subr.mxu0 0.0
    %438 = vmatpush1.msra.mxu0 %v368
    %439 = vmatprep.subr.mxu0 0.0
    %440 = vmatpush1.msra.mxu0 %v369
    %441 = vmatprep.mubr.f32.mxu0 %v337
    %442 = vmatmul.mubr.f32.gmra.mrb[0].mxu0 %v336
    %v443 = vpop.f32.mrb[0].mxu0
    %v444 = vadd.f32 %v375, %v443
    %v445 = vpop.f32.mrb[0].mxu0
    %446 = vdwg.mxu0
    %447 = vst [vmem:[%s7] sm:$0xff] %v444
    // Predicated region
    $region42: #{conv_decoder_forward.1} parent=1 // pred_check
      _
    $region43: #{conv_decoder_forward.1} parent=1 // pred_check_branch
      %449 = sbr.rel (0) target = $region45
    $region44: #{conv_decoder_forward.1} parent=1 // pred_region
      _
    $region45: #{conv_decoder_forward.1} parent=1 // pred_fallthru
      _
    // Predicated region
    $region46: #{conv_decoder_forward.1} parent=1 // pred_check
      _
    $region47: #{conv_decoder_forward.1} parent=1 // pred_check_branch
      %451 = sbr.rel (0) target = $region49
    $region48: #{conv_decoder_forward.1} parent=1 // pred_region
      _
    $region49: #{conv_decoder_forward.1} parent=1 // pred_fallthru
      _
    %452 = vsyncpa [#allocation3], 1
    %453 = vsyncpa [#allocation5], 1

</llo_original>
